<compile_context>
chip_gen: v7x
topology: tpu7x:2x2x1
jax: 0.10.0
libtpu: 0.0.40
codegen_flags: <defaults>
</compile_context>

<pallas_src>
import functools

import jax
import jax.numpy as jnp
from jax.experimental import pallas as pl
from jax.experimental.pallas import tpu as pltpu


def _frm_scr_loss_kernel(frm_ref, label_ref, out_ref, acc_ref, *, k, c,
                         inv_n, inv_nt):
    step = pl.program_id(1)

    @pl.when(step == 0)
    def _():
        acc_ref[...] = jnp.zeros_like(acc_ref)

    x = frm_ref[...].astype(jnp.float32)        # (B, c, t)  time on lanes
    lab = label_ref[...].astype(jnp.float32)    # (B, c, 1)

    shape = x.shape
    t = shape[2]

    # Hoisted loop-invariant tensors (JAX does not CSE broadcast_in_dim).
    t_iota = jax.lax.broadcasted_iota(jnp.int32, shape, 2)
    sentinel = jnp.full(shape, t, jnp.int32)
    neg_full = jnp.full(shape, -1e30, jnp.float32)
    pos_full = jnp.full(shape, 1e30, jnp.float32)

    # Fused top-k (largest) and bottom-k (smallest) over the time/lane axis.
    cur_max = x
    cur_min = x
    acc_max = jnp.zeros(shape[:2] + (1,), jnp.float32)
    acc_min = jnp.zeros(shape[:2] + (1,), jnp.float32)
    for _ in range(k):  # k is static; unrolled at trace time
        m = jnp.max(cur_max, axis=2, keepdims=True)      # (B, c, 1)
        mn = jnp.min(cur_min, axis=2, keepdims=True)     # (B, c, 1)
        acc_max = acc_max + m
        acc_min = acc_min + mn
        # Mask exactly one occurrence of the selected value per (sample, class).
        hit_max = jnp.min(jnp.where(cur_max == m, t_iota, sentinel),
                          axis=2, keepdims=True)
        hit_min = jnp.min(jnp.where(cur_min == mn, t_iota, sentinel),
                          axis=2, keepdims=True)
        cur_max = jnp.where(t_iota == hit_max, neg_full, cur_max)
        cur_min = jnp.where(t_iota == hit_min, pos_full, cur_min)

    inv_k = jnp.float32(1.0 / k)
    mean_max = acc_max * inv_k                  # (B, c, 1)
    mean_min = acc_min * inv_k                  # (B, c, 1)

    # temporal:  mean_n( sum_c( (mean_min - mean_max) * label ) )
    tl = (mean_min - mean_max) * lab                                 # (B, c, 1)
    tsum = jnp.sum(jnp.sum(tl, axis=1, keepdims=True), axis=0)       # (1, 1)

    # categorical: -mean_{n,t}( | max_{cls<C-1}(x*label) - (x*label)[C-1] | )
    xs = x * lab                                                     # (B, c, t)
    cls_iota = jax.lax.broadcasted_iota(jnp.int32, shape, 1)
    act = jnp.max(jnp.where(cls_iota < c - 1, xs, neg_full),
                  axis=1, keepdims=True)                             # (B, 1, t)
    bck = xs[:, c - 1:c, :]                                          # (B, 1, t)
    ad = jnp.abs(act - bck)
    csum = jnp.sum(jnp.sum(ad, axis=2, keepdims=True), axis=0)       # (1, 1)

    acc_ref[...] += tsum * jnp.float32(inv_n) - csum * jnp.float32(inv_nt)

    @pl.when(step == pl.num_programs(1) - 1)
    def _():
        out_ref[...] = acc_ref[...].reshape(1, 1, 1)


def frm_scr_loss(frm_scrs, label, proportion, *, block_batch=None):
    n, t, c = frm_scrs.shape
    k = max(int(t // proportion), 1)

    # Lane-dense layout: time -> lanes, classes -> sublanes. Original dtype kept.
    x = jnp.transpose(frm_scrs, (0, 2, 1))          # (n, c, t)
    lab = label.reshape(n, c, 1)

    # Per-step batch: target ~1 MiB of f32 working data per block.
    if block_batch is None:
        per_sample = t * c * 4
        block_batch = max(1, min(n, (1 << 20) // max(per_sample, 1)))

    num_blocks = -(-n // block_batch)
    num_groups = 2 if num_blocks >= 2 else 1   # megacore split (v7x); harmless on 1-TC chips
    bpg = -(-num_blocks // num_groups)         # blocks per group
    n_pad = num_groups * bpg * block_batch
    if n_pad != n:
        pad = n_pad - n
        # Zero-padded samples have zero label -> contribute exactly 0 to both terms.
        x = jnp.pad(x, ((0, pad), (0, 0), (0, 0)))
        lab = jnp.pad(lab, ((0, pad), (0, 0), (0, 0)))

    kernel = functools.partial(
        _frm_scr_loss_kernel, k=k, c=c,
        inv_n=1.0 / n, inv_nt=1.0 / (n * t))

    in_map = lambda g, i: (g * bpg + i, 0, 0)
    out = pl.pallas_call(
        kernel,
        out_shape=jax.ShapeDtypeStruct((num_groups, 1, 1), jnp.float32),
        grid=(num_groups, bpg),
        in_specs=[
            pl.BlockSpec((block_batch, c, t), in_map),
            pl.BlockSpec((block_batch, c, 1), in_map),
        ],
        out_specs=pl.BlockSpec((1, 1, 1), lambda g, i: (g, 0, 0)),
        scratch_shapes=[pltpu.VMEM((1, 1), jnp.float32)],
        compiler_params=pltpu.CompilerParams(
            dimension_semantics=("parallel", "arbitrary"),
            vmem_limit_bytes=48 * 1024 * 1024),
    )(x, lab)
    return jnp.sum(out)


def frm_scr_loss_ref(frm_scrs, label, proportion):
    """Pure-JAX reference mirroring the PyTorch forward."""
    n, t, c = frm_scrs.shape
    k = max(int(t // proportion), 1)
    srt = jnp.sort(frm_scrs, axis=1)                      # ascending along time
    mean_max = jnp.mean(srt[:, t - k:, :], axis=1)
    mean_min = jnp.mean(srt[:, :k, :], axis=1)
    temporal = jnp.mean(jnp.sum((mean_min - mean_max) * label, axis=-1))
    xs = frm_scrs * label[:, None, :]
    act = jnp.max(xs[..., :-1], axis=-1)
    bck = xs[..., -1]
    categorical = -jnp.mean(jnp.abs(act - bck))
    return temporal + categorical


if __name__ == "__main__":
    key = jax.random.PRNGKey(0)
    k1, k2 = jax.random.split(key)

    n, t, c = 2, 16, 8        # batch, time steps, classes (incl. background)
    proportion = 4            # -> top-k with k = t // proportion = 4

    frm_scrs = jax.random.normal(k1, (n, t, c), dtype=jnp.float32)
    label = (jax.random.uniform(k2, (n, c)) > 0.5).astype(jnp.float32)

    loss = frm_scr_loss(frm_scrs, label, proportion)
    loss = jax.block_until_ready(loss)

    ref = frm_scr_loss_ref(frm_scrs, label, proportion)
    assert jnp.allclose(loss, ref, rtol=1e-5, atol=1e-5), (loss, ref)

    print("KERNEL_OK")
</pallas_src>

<mosaic_0001>
module attributes {stable_mosaic.version = 11 : i64} {
  func.func @_frm_scr_loss_kernel(%arg0: i32, %arg1: i32, %arg2: memref<2x8x16xf32, #tpu.memory_space<vmem>>, %arg3: memref<2x8x1xf32, #tpu.memory_space<vmem>>, %arg4: memref<1x1x1xf32, #tpu.memory_space<vmem>>, %arg5: memref<1x1xf32, #tpu.memory_space<vmem>>) attributes {dimension_semantics = [#tpu.dimension_semantics<parallel>, #tpu.dimension_semantics<arbitrary>], iteration_bounds = array<i64: 1, 1>, scalar_prefetch = 0 : i64, scratch_operands = 1 : i64, tpu.core_type = #tpu.core_type<tc>, window_params = [{transform_indices = @transform_0, window_bounds = array<i64: 2, 8, 16>}, {transform_indices = @transform_1, window_bounds = array<i64: 2, 8, 1>}, {transform_indices = @transform_2, window_bounds = array<i64: 1, 1, 1>}]} {
    %c0_i32 = arith.constant 0 : i32
    %0 = arith.cmpi eq, %arg1, %c0_i32 : i32
    %1 = arith.extui %0 : i1 to i32
    %c0_i32_0 = arith.constant 0 : i32
    %2 = arith.cmpi ne, %1, %c0_i32_0 : i32
    scf.if %2 {
      %cst_38 = arith.constant 0.000000e+00 : f32
      %117 = vector.broadcast %cst_38 : f32 to vector<1x1xf32>
      %c0_39 = arith.constant 0 : index
      %c0_40 = arith.constant 0 : index
      %118 = vector.load %arg5[%c0_39, %c0_40] : memref<1x1xf32, #tpu.memory_space<vmem>>, vector<1x1xf32>
      tpu.vector_store %arg5[%c0_39, %c0_40], %117 {strides = array<i32>} : memref<1x1xf32, #tpu.memory_space<vmem>>, vector<1x1xf32>,
    } else {
    }
    %c0 = arith.constant 0 : index
    %c0_1 = arith.constant 0 : index
    %c0_2 = arith.constant 0 : index
    %3 = vector.load %arg2[%c0, %c0_1, %c0_2] : memref<2x8x16xf32, #tpu.memory_space<vmem>>, vector<2x8x16xf32>
    %c0_3 = arith.constant 0 : index
    %c0_4 = arith.constant 0 : index
    %c0_5 = arith.constant 0 : index
    %4 = vector.load %arg3[%c0_3, %c0_4, %c0_5] : memref<2x8x1xf32, #tpu.memory_space<vmem>>, vector<2x8x1xf32>
    %5 = tpu.iota {dimensions = array<i32: 2>} : vector<2x8x16xi32>
    %c16_i32 = arith.constant 16 : i32
    %6 = vector.broadcast %c16_i32 : i32 to vector<2x8x16xi32>
    %cst = arith.constant -1.000000e+30 : f32
    %7 = vector.broadcast %cst : f32 to vector<2x8x16xf32>
    %cst_6 = arith.constant 1.000000e+30 : f32
    %8 = vector.broadcast %cst_6 : f32 to vector<2x8x16xf32>
    %cst_7 = arith.constant 0.000000e+00 : f32
    %9 = vector.broadcast %cst_7 : f32 to vector<2x8x1xf32>
    %cst_8 = arith.constant 0.000000e+00 : f32
    %10 = vector.broadcast %cst_8 : f32 to vector<2x8x1xf32>
    %cst_9 = arith.constant dense<0xFF800000> : vector<2x8xf32>
    %11 = vector.multi_reduction <maximumf>, %3, %cst_9 [2] : vector<2x8x16xf32> to vector<2x8xf32>
    %12 = vector.shape_cast %11 : vector<2x8xf32> to vector<2x8x1xf32>
    %cst_10 = arith.constant dense<0x7F800000> : vector<2x8xf32>
    %13 = vector.multi_reduction <minimumf>, %3, %cst_10 [2] : vector<2x8x16xf32> to vector<2x8xf32>
    %14 = vector.shape_cast %13 : vector<2x8xf32> to vector<2x8x1xf32>
    %15 = arith.addf %9, %12 : vector<2x8x1xf32>
    %16 = arith.addf %10, %14 : vector<2x8x1xf32>
    %17 = vector.broadcast %12 : vector<2x8x1xf32> to vector<2x8x16xf32>
    %18 = arith.cmpf oeq, %3, %17 : vector<2x8x16xf32>
    %19 = arith.select %18, %5, %6 : vector<2x8x16xi1>, vector<2x8x16xi32>
    %cst_11 = arith.constant dense<2147483647> : vector<2x8xi32>
    %20 = vector.multi_reduction <minsi>, %19, %cst_11 [2] : vector<2x8x16xi32> to vector<2x8xi32>
    %21 = vector.shape_cast %20 : vector<2x8xi32> to vector<2x8x1xi32>
    %22 = vector.broadcast %14 : vector<2x8x1xf32> to vector<2x8x16xf32>
    %23 = arith.cmpf oeq, %3, %22 : vector<2x8x16xf32>
    %24 = arith.select %23, %5, %6 : vector<2x8x16xi1>, vector<2x8x16xi32>
    %cst_12 = arith.constant dense<2147483647> : vector<2x8xi32>
    %25 = vector.multi_reduction <minsi>, %24, %cst_12 [2] : vector<2x8x16xi32> to vector<2x8xi32>
    %26 = vector.shape_cast %25 : vector<2x8xi32> to vector<2x8x1xi32>
    %27 = vector.broadcast %21 : vector<2x8x1xi32> to vector<2x8x16xi32>
    %28 = arith.cmpi eq, %5, %27 : vector<2x8x16xi32>
    %29 = arith.select %28, %7, %3 : vector<2x8x16xi1>, vector<2x8x16xf32>
    %30 = vector.broadcast %26 : vector<2x8x1xi32> to vector<2x8x16xi32>
    %31 = arith.cmpi eq, %5, %30 : vector<2x8x16xi32>
    %32 = arith.select %31, %8, %3 : vector<2x8x16xi1>, vector<2x8x16xf32>
    %cst_13 = arith.constant dense<0xFF800000> : vector<2x8xf32>
    %33 = vector.multi_reduction <maximumf>, %29, %cst_13 [2] : vector<2x8x16xf32> to vector<2x8xf32>
    %34 = vector.shape_cast %33 : vector<2x8xf32> to vector<2x8x1xf32>
    %cst_14 = arith.constant dense<0x7F800000> : vector<2x8xf32>
    %35 = vector.multi_reduction <minimumf>, %32, %cst_14 [2] : vector<2x8x16xf32> to vector<2x8xf32>
    %36 = vector.shape_cast %35 : vector<2x8xf32> to vector<2x8x1xf32>
    %37 = arith.addf %15, %34 : vector<2x8x1xf32>
    %38 = arith.addf %16, %36 : vector<2x8x1xf32>
    %39 = vector.broadcast %34 : vector<2x8x1xf32> to vector<2x8x16xf32>
    %40 = arith.cmpf oeq, %29, %39 : vector<2x8x16xf32>
    %41 = arith.select %40, %5, %6 : vector<2x8x16xi1>, vector<2x8x16xi32>
    %cst_15 = arith.constant dense<2147483647> : vector<2x8xi32>
    %42 = vector.multi_reduction <minsi>, %41, %cst_15 [2] : vector<2x8x16xi32> to vector<2x8xi32>
    %43 = vector.shape_cast %42 : vector<2x8xi32> to vector<2x8x1xi32>
    %44 = vector.broadcast %36 : vector<2x8x1xf32> to vector<2x8x16xf32>
    %45 = arith.cmpf oeq, %32, %44 : vector<2x8x16xf32>
    %46 = arith.select %45, %5, %6 : vector<2x8x16xi1>, vector<2x8x16xi32>
    %cst_16 = arith.constant dense<2147483647> : vector<2x8xi32>
    %47 = vector.multi_reduction <minsi>, %46, %cst_16 [2] : vector<2x8x16xi32> to vector<2x8xi32>
    %48 = vector.shape_cast %47 : vector<2x8xi32> to vector<2x8x1xi32>
    %49 = vector.broadcast %43 : vector<2x8x1xi32> to vector<2x8x16xi32>
    %50 = arith.cmpi eq, %5, %49 : vector<2x8x16xi32>
    %51 = arith.select %50, %7, %29 : vector<2x8x16xi1>, vector<2x8x16xf32>
    %52 = vector.broadcast %48 : vector<2x8x1xi32> to vector<2x8x16xi32>
    %53 = arith.cmpi eq, %5, %52 : vector<2x8x16xi32>
    %54 = arith.select %53, %8, %32 : vector<2x8x16xi1>, vector<2x8x16xf32>
    %cst_17 = arith.constant dense<0xFF800000> : vector<2x8xf32>
    %55 = vector.multi_reduction <maximumf>, %51, %cst_17 [2] : vector<2x8x16xf32> to vector<2x8xf32>
    %56 = vector.shape_cast %55 : vector<2x8xf32> to vector<2x8x1xf32>
    %cst_18 = arith.constant dense<0x7F800000> : vector<2x8xf32>
    %57 = vector.multi_reduction <minimumf>, %54, %cst_18 [2] : vector<2x8x16xf32> to vector<2x8xf32>
    %58 = vector.shape_cast %57 : vector<2x8xf32> to vector<2x8x1xf32>
    %59 = arith.addf %37, %56 : vector<2x8x1xf32>
    %60 = arith.addf %38, %58 : vector<2x8x1xf32>
    %61 = vector.broadcast %56 : vector<2x8x1xf32> to vector<2x8x16xf32>
    %62 = arith.cmpf oeq, %51, %61 : vector<2x8x16xf32>
    %63 = arith.select %62, %5, %6 : vector<2x8x16xi1>, vector<2x8x16xi32>
    %cst_19 = arith.constant dense<2147483647> : vector<2x8xi32>
    %64 = vector.multi_reduction <minsi>, %63, %cst_19 [2] : vector<2x8x16xi32> to vector<2x8xi32>
    %65 = vector.shape_cast %64 : vector<2x8xi32> to vector<2x8x1xi32>
    %66 = vector.broadcast %58 : vector<2x8x1xf32> to vector<2x8x16xf32>
    %67 = arith.cmpf oeq, %54, %66 : vector<2x8x16xf32>
    %68 = arith.select %67, %5, %6 : vector<2x8x16xi1>, vector<2x8x16xi32>
    %cst_20 = arith.constant dense<2147483647> : vector<2x8xi32>
    %69 = vector.multi_reduction <minsi>, %68, %cst_20 [2] : vector<2x8x16xi32> to vector<2x8xi32>
    %70 = vector.shape_cast %69 : vector<2x8xi32> to vector<2x8x1xi32>
    %71 = vector.broadcast %65 : vector<2x8x1xi32> to vector<2x8x16xi32>
    %72 = arith.cmpi eq, %5, %71 : vector<2x8x16xi32>
    %73 = arith.select %72, %7, %51 : vector<2x8x16xi1>, vector<2x8x16xf32>
    %74 = vector.broadcast %70 : vector<2x8x1xi32> to vector<2x8x16xi32>
    %75 = arith.cmpi eq, %5, %74 : vector<2x8x16xi32>
    %76 = arith.select %75, %8, %54 : vector<2x8x16xi1>, vector<2x8x16xf32>
    %cst_21 = arith.constant dense<0xFF800000> : vector<2x8xf32>
    %77 = vector.multi_reduction <maximumf>, %73, %cst_21 [2] : vector<2x8x16xf32> to vector<2x8xf32>
    %78 = vector.shape_cast %77 : vector<2x8xf32> to vector<2x8x1xf32>
    %cst_22 = arith.constant dense<0x7F800000> : vector<2x8xf32>
    %79 = vector.multi_reduction <minimumf>, %76, %cst_22 [2] : vector<2x8x16xf32> to vector<2x8xf32>
    %80 = vector.shape_cast %79 : vector<2x8xf32> to vector<2x8x1xf32>
    %81 = arith.addf %59, %78 : vector<2x8x1xf32>
    %82 = arith.addf %60, %80 : vector<2x8x1xf32>
    %cst_23 = arith.constant 2.500000e-01 : f32
    %83 = vector.broadcast %cst_23 : f32 to vector<2x8x1xf32>
    %84 = arith.mulf %81, %83 : vector<2x8x1xf32>
    %cst_24 = arith.constant 2.500000e-01 : f32
    %85 = vector.broadcast %cst_24 : f32 to vector<2x8x1xf32>
    %86 = arith.mulf %82, %85 : vector<2x8x1xf32>
    %87 = arith.subf %86, %84 : vector<2x8x1xf32>
    %88 = arith.mulf %87, %4 : vector<2x8x1xf32>
    %cst_25 = arith.constant dense<0.000000e+00> : vector<2x1xf32>
    %89 = vector.multi_reduction <add>, %88, %cst_25 [1] : vector<2x8x1xf32> to vector<2x1xf32>
    %90 = vector.shape_cast %89 : vector<2x1xf32> to vector<2x1x1xf32>
    %cst_26 = arith.constant dense<0.000000e+00> : vector<1x1xf32>
    %91 = vector.multi_reduction <add>, %90, %cst_26 [0] : vector<2x1x1xf32> to vector<1x1xf32>
    %92 = vector.broadcast %4 : vector<2x8x1xf32> to vector<2x8x16xf32>
    %93 = arith.mulf %3, %92 : vector<2x8x16xf32>
    %94 = tpu.iota {dimensions = array<i32: 1>} : vector<2x8x16xi32>
    %c7_i32 = arith.constant 7 : i32
    %95 = vector.broadcast %c7_i32 : i32 to vector<2x8x16xi32>
    %96 = arith.cmpi slt, %94, %95 : vector<2x8x16xi32>
    %97 = arith.select %96, %93, %7 : vector<2x8x16xi1>, vector<2x8x16xf32>
    %cst_27 = arith.constant dense<0xFF800000> : vector<2x16xf32>
    %98 = vector.multi_reduction <maximumf>, %97, %cst_27 [1] : vector<2x8x16xf32> to vector<2x16xf32>
    %99 = vector.shape_cast %98 : vector<2x16xf32> to vector<2x1x16xf32>
    %100 = vector.extract_strided_slice %93 {offsets = [0, 7, 0], sizes = [2, 1, 16], strides = [1, 1, 1]} : vector<2x8x16xf32> to vector<2x1x16xf32>
    %101 = arith.subf %99, %100 : vector<2x1x16xf32>
    %102 = math.absf %101 : vector<2x1x16xf32>
    %cst_28 = arith.constant dense<0.000000e+00> : vector<2x1xf32>
    %103 = vector.multi_reduction <add>, %102, %cst_28 [2] : vector<2x1x16xf32> to vector<2x1xf32>
    %104 = vector.shape_cast %103 : vector<2x1xf32> to vector<2x1x1xf32>
    %cst_29 = arith.constant dense<0.000000e+00> : vector<1x1xf32>
    %105 = vector.multi_reduction <add>, %104, %cst_29 [0] : vector<2x1x1xf32> to vector<1x1xf32>
    %c0_30 = arith.constant 0 : index
    %c0_31 = arith.constant 0 : index
    %106 = vector.load %arg5[%c0_30, %c0_31] : memref<1x1xf32, #tpu.memory_space<vmem>>, vector<1x1xf32>
    %cst_32 = arith.constant 5.000000e-01 : f32
    %107 = vector.broadcast %cst_32 : f32 to vector<1x1xf32>
    %108 = arith.mulf %91, %107 : vector<1x1xf32>
    %cst_33 = arith.constant 3.125000e-02 : f32
    %109 = vector.broadcast %cst_33 : f32 to vector<1x1xf32>
    %110 = arith.mulf %105, %109 : vector<1x1xf32>
    %111 = arith.subf %108, %110 : vector<1x1xf32>
    %112 = arith.addf %106, %111 : vector<1x1xf32>
    %c0_34 = arith.constant 0 : index
    %c0_35 = arith.constant 0 : index
    %113 = vector.load %arg5[%c0_34, %c0_35] : memref<1x1xf32, #tpu.memory_space<vmem>>, vector<1x1xf32>
    tpu.vector_store %arg5[%c0_34, %c0_35], %112 {strides = array<i32>} : memref<1x1xf32, #tpu.memory_space<vmem>>, vector<1x1xf32>,
    %c0_i32_36 = arith.constant 0 : i32
    %114 = arith.cmpi eq, %arg1, %c0_i32_36 : i32
    %115 = arith.extui %114 : i1 to i32
    %c0_i32_37 = arith.constant 0 : i32
    %116 = arith.cmpi ne, %115, %c0_i32_37 : i32
    scf.if %116 {
      %c0_38 = arith.constant 0 : index
      %c0_39 = arith.constant 0 : index
      %117 = vector.load %arg5[%c0_38, %c0_39] : memref<1x1xf32, #tpu.memory_space<vmem>>, vector<1x1xf32>
      %118 = vector.shape_cast %117 : vector<1x1xf32> to vector<1x1x1xf32>
      %c0_40 = arith.constant 0 : index
      %c0_41 = arith.constant 0 : index
      %c0_42 = arith.constant 0 : index
      %119 = vector.load %arg4[%c0_40, %c0_41, %c0_42] : memref<1x1x1xf32, #tpu.memory_space<vmem>>, vector<1x1x1xf32>
      tpu.vector_store %arg4[%c0_40, %c0_41, %c0_42], %118 {strides = array<i32>} : memref<1x1x1xf32, #tpu.memory_space<vmem>>, vector<1x1x1xf32>,
    } else {
    }
    return
  }
  func.func @transform_0(%arg0: i32, %arg1: i32) -> (i32, i32, i32) {
    %c1_i32 = arith.constant 1 : i32
    %0 = arith.muli %arg0, %c1_i32 : i32
    %1 = arith.addi %0, %arg1 : i32
    %c0_i32 = arith.constant 0 : i32
    %c0_i32_0 = arith.constant 0 : i32
    %c0_i32_1 = arith.constant 0 : i32
    return %1, %c0_i32, %c0_i32_0 : i32, i32, i32
  }
  func.func @transform_1(%arg0: i32, %arg1: i32) -> (i32, i32, i32) {
    %c1_i32 = arith.constant 1 : i32
    %0 = arith.muli %arg0, %c1_i32 : i32
    %1 = arith.addi %0, %arg1 : i32
    %c0_i32 = arith.constant 0 : i32
    %c0_i32_0 = arith.constant 0 : i32
    %c0_i32_1 = arith.constant 0 : i32
    return %1, %c0_i32, %c0_i32_0 : i32, i32, i32
  }
  func.func @transform_2(%arg0: i32, %arg1: i32) -> (i32, i32, i32) {
    %c0_i32 = arith.constant 0 : i32
    %c0_i32_0 = arith.constant 0 : i32
    %c0_i32_1 = arith.constant 0 : i32
    return %arg0, %c0_i32, %c0_i32_0 : i32, i32, i32
  }
}

</mosaic_0001>

<llo_original>
// kernel: tpu_custom_call.1
$region0: #{tpu_custom_call.1}
  #allocation0 [shape = 'u32[]', space=smem, size = 0x4, offset = 0x4, fixed_abs, tag = 'smem constant byte address 0x4 - core index']
  #allocation1 [shape = 'u32[144,128]{1,0:T(1,128)}', space=vmem, size = 0x12000, scoped, tag = 'internal scratch']
  #allocation2 [shape = 'f32[1,1]{1,0:T(1,128)}', space=vmem, size = 0x200, scoped, tag = 'scratch operand']
  %s0 = inlined_call_operand.vmem [shape: f32[2,8,16], index: 0, kind: input, shape index: {}]
  %s1 = inlined_call_operand.vmem [shape: f32[2,8,1], index: 1, kind: input, shape index: {}]
  %s2 = inlined_call_operand.hbm [shape: f32[1,1,1], index: 2, kind: output, shape index: {}]
  %s3 = sld [smem:[#allocation0]]
  $region26: #{tpu_custom_call.1} parent=0
    _
  %s5 = ssub.s32 1, %s3
  %s6 = scalar_select 0, %s5, %s3
  $region1: #{tpu_custom_call.1} parent=0
    #allocation3 [shape = 'u8[512]{0}', space=vmem, size = 0x400, scoped, tag = 'output window, operand 0, single buffered']
    #allocation4 [shape = 's32[1]{0}', space=sflag, size = 0x4, scoped, tag = 'scoped memory for tpu_custom_call.1']
    %7 = vsyncpa [#allocation4], 0
    // Predicated region
    $region2: #{tpu_custom_call.1} parent=1 // pred_check
      _
    $region3: #{tpu_custom_call.1} parent=1 // pred_check_branch
      %9 = sbr.rel (0) target = $region5
    $region4: #{tpu_custom_call.1} parent=1 // pred_region
      %s10 = sadd.s32 0, 0
      %s11 = smul.u32 2, %s10
      %p12 = scmp.lt.s32.totalorder %s11, 1
      %s13 = scalar_select %p12, %s11, 1
      %s14 = smul.addr %s13, 8
      %s15 = scalar_lea.vmem %s0, %s14
      %s16 = sadd.s32 0, 0
      %s17 = smul.u32 2, %s16
    $region5: #{tpu_custom_call.1} parent=1 // pred_fallthru
      _
    // Predicated region
    $region6: #{tpu_custom_call.1} parent=1 // pred_check
      _
    $region7: #{tpu_custom_call.1} parent=1 // pred_check_branch
      %19 = sbr.rel (0) target = $region9
    $region8: #{tpu_custom_call.1} parent=1 // pred_region
      %s20 = sadd.s32 0, 0
      %s21 = smul.u32 2, %s20
      %p22 = scmp.lt.s32.totalorder %s21, 1
      %s23 = scalar_select %p22, %s21, 1
      %s24 = smul.addr %s23, 8
      %s25 = scalar_lea.vmem %s1, %s24
      %s26 = sadd.s32 0, 0
      %s27 = smul.u32 2, %s26
    $region9: #{tpu_custom_call.1} parent=1 // pred_fallthru
      _
    %s28 = sadd.s32 0, 0
    %s29 = smul.u32 2, %s28
    %p30 = scmp.lt.s32.totalorder %s29, 1
    %s31 = scalar_select %p30, %s29, 1
    %s32 = smul.addr %s31, 8
    %s33 = scalar_lea.vmem %s0, %s32
    %s34 = sadd.s32 0, 0
    %s35 = smul.u32 2, %s34
    %p36 = scmp.lt.s32.totalorder %s35, 1
    %s37 = scalar_select %p36, %s35, 1
    %s38 = smul.addr %s37, 8
    %s39 = scalar_lea.vmem %s1, %s38
    %s40 = sadd.s32 0, 0
    %s41 = smul.u32 2, %s40
    %p42 = scmp.lt.s32.totalorder %s41, 1
    %s43 = scalar_select %p42, %s41, 1
    %s44 = smul.addr %s43, 8
    %s45 = scalar_lea.vmem %s0, %s44
    %s46 = sadd.s32 0, 0
    %s47 = smul.u32 2, %s46
    %s48 = sadd.s32 0, 0
    %s49 = smul.u32 2, %s48
    %p50 = scmp.lt.s32.totalorder %s49, 1
    %s51 = scalar_select %p50, %s49, 1
    %s52 = smul.addr %s51, 8
    %s53 = scalar_lea.vmem %s1, %s52
    %s54 = sadd.s32 0, 0
    %s55 = smul.u32 2, %s54
    %p56 = scmp.eq.s32.totalorder 0, 0
    // Predicated region
    $region10: #{tpu_custom_call.1} parent=1 // pred_check
      %p57 = pneg %p56
    $region11: #{tpu_custom_call.1} parent=1 // pred_check_branch
      %59 = sbr.rel (%p57) target = $region13
    $region12: #{tpu_custom_call.1} parent=1 // pred_region
      %vm60 = vcmask 0
      %61 = vst.msk [vmem:[#allocation2] sm:$0x1] %vm60, 0.0
    $region13: #{tpu_custom_call.1} parent=1 // pred_fallthru
      _
    %v62 = vld [vmem:[%s45] sm:$0xff]
    %v63 = vld [vmem:[%s45 + $0x8] sm:$0xff]
    %v64 = vld [vmem:[%s53] sm:$0xff]
    %v65 = vld [vmem:[%s53 + $0x8] sm:$0xff]
    %v66 = vlaneseq
    %v67 = vand.u32 %v66, 127
    %vm68 = vcmask 130048
    %v69 = vsel %vm68, %v62, -inf
    %70 = vmax.xlane.f32.xlu0 %v69
    %v71 = vpop.xlane.xlu0 %70
    %v72 = vsel %vm68, %v63, -inf
    %73 = vmax.xlane.f32.xlu0 %v72
    %v74 = vpop.xlane.xlu0 %73
    %v75 = vsel %vm68, %v62, inf
    %76 = vmin.xlane.f32.xlu0 %v75
    %v77 = vpop.xlane.xlu0 %76
    %v78 = vsel %vm68, %v63, inf
    %79 = vmin.xlane.f32.xlu0 %v78
    %v80 = vpop.xlane.xlu0 %79
    %v81 = vadd.f32 %v71, 0.0
    %v82 = vadd.f32 %v74, 0.0
    %v83 = vadd.f32 %v77, 0.0
    %v84 = vadd.f32 %v80, 0.0
    %vm85 = vcmp.eq.f32.partialorder %v62, %v71
    %vm86 = vcmp.eq.f32.partialorder %v63, %v74
    %v87 = vsel %vm85, %v67, 16
    %v88 = vsel %vm86, %v67, 16
    %v89 = vsel %vm68, %v87, 2147483647
    %v90 = vand.u32 %v89, 65535
    %v91 = vshra.s32 %v89, 16
    %v92 = vcvt.s32.f32 %v90
    %v93 = vcvt.s32.f32 %v91
    %94 = vmin.xlane.f32.xlu0 %v93
    %v95 = vpop.xlane.xlu0 %94
    %vm96 = vcmp.eq.f32.partialorder %v93, %v95
    %v97 = vsel %vm96, %v92, inf
    %98 = vmin.xlane.f32.xlu0 %v97
    %v99 = vpop.xlane.xlu0 %98
    %v100 = vcvt.f32.s32 %v99
    %v101 = vcvt.f32.s32 %v95
    %v102 = vshll.u32 %v101, 16
    %v103 = vadd.s32 %v102, %v100
    %v104 = vsel %vm68, %v88, 2147483647
    %v105 = vand.u32 %v104, 65535
    %v106 = vshra.s32 %v104, 16
    %v107 = vcvt.s32.f32 %v105
    %v108 = vcvt.s32.f32 %v106
    %109 = vmin.xlane.f32.xlu0 %v108
    %v110 = vpop.xlane.xlu0 %109
    %vm111 = vcmp.eq.f32.partialorder %v108, %v110
    %v112 = vsel %vm111, %v107, inf
    %113 = vmin.xlane.f32.xlu0 %v112
    %v114 = vpop.xlane.xlu0 %113
    %v115 = vcvt.f32.s32 %v114
    %v116 = vcvt.f32.s32 %v110
    %v117 = vshll.u32 %v116, 16
    %v118 = vadd.s32 %v117, %v115
    %vm119 = vcmp.eq.f32.partialorder %v62, %v77
    %vm120 = vcmp.eq.f32.partialorder %v63, %v80
    %v121 = vsel %vm119, %v67, 16
    %v122 = vsel %vm120, %v67, 16
    %v123 = vsel %vm68, %v121, 2147483647
    %v124 = vand.u32 %v123, 65535
    %v125 = vshra.s32 %v123, 16
    %v126 = vcvt.s32.f32 %v124
    %v127 = vcvt.s32.f32 %v125
    %128 = vmin.xlane.f32.xlu0 %v127
    %v129 = vpop.xlane.xlu0 %128
    %vm130 = vcmp.eq.f32.partialorder %v127, %v129
    %v131 = vsel %vm130, %v126, inf
    %132 = vmin.xlane.f32.xlu0 %v131
    %v133 = vpop.xlane.xlu0 %132
    %v134 = vcvt.f32.s32 %v133
    %v135 = vcvt.f32.s32 %v129
    %v136 = vshll.u32 %v135, 16
    %v137 = vadd.s32 %v136, %v134
    %v138 = vsel %vm68, %v122, 2147483647
    %v139 = vand.u32 %v138, 65535
    %v140 = vshra.s32 %v138, 16
    %v141 = vcvt.s32.f32 %v139
    %v142 = vcvt.s32.f32 %v140
    %143 = vmin.xlane.f32.xlu0 %v142
    %v144 = vpop.xlane.xlu0 %143
    %vm145 = vcmp.eq.f32.partialorder %v142, %v144
    %v146 = vsel %vm145, %v141, inf
    %147 = vmin.xlane.f32.xlu0 %v146
    %v148 = vpop.xlane.xlu0 %147
    %v149 = vcvt.f32.s32 %v148
    %v150 = vcvt.f32.s32 %v144
    %v151 = vshll.u32 %v150, 16
    %v152 = vadd.s32 %v151, %v149
    %vm153 = vcmp.eq.s32.totalorder %v67, %v103
    %vm154 = vcmp.eq.s32.totalorder %v67, %v118
    %v155 = vsel %vm153, -1e+30, %v62
    %v156 = vsel %vm154, -1e+30, %v63
    %vm157 = vcmp.eq.s32.totalorder %v67, %v137
    %vm158 = vcmp.eq.s32.totalorder %v67, %v152
    %v159 = vsel %vm157, 1e+30, %v62
    %v160 = vsel %vm158, 1e+30, %v63
    %v161 = vsel %vm68, %v155, -inf
    %162 = vmax.xlane.f32.xlu0 %v161
    %v163 = vpop.xlane.xlu0 %162
    %v164 = vsel %vm68, %v156, -inf
    %165 = vmax.xlane.f32.xlu0 %v164
    %v166 = vpop.xlane.xlu0 %165
    %v167 = vsel %vm68, %v159, inf
    %168 = vmin.xlane.f32.xlu0 %v167
    %v169 = vpop.xlane.xlu0 %168
    %v170 = vsel %vm68, %v160, inf
    %171 = vmin.xlane.f32.xlu0 %v170
    %v172 = vpop.xlane.xlu0 %171
    %v173 = vadd.f32 %v81, %v163
    %v174 = vadd.f32 %v82, %v166
    %v175 = vadd.f32 %v83, %v169
    %v176 = vadd.f32 %v84, %v172
    %vm177 = vcmp.eq.f32.partialorder %v155, %v163
    %vm178 = vcmp.eq.f32.partialorder %v156, %v166
    %v179 = vsel %vm177, %v67, 16
    %v180 = vsel %vm178, %v67, 16
    %v181 = vsel %vm68, %v179, 2147483647
    %v182 = vand.u32 %v181, 65535
    %v183 = vshra.s32 %v181, 16
    %v184 = vcvt.s32.f32 %v182
    %v185 = vcvt.s32.f32 %v183
    %186 = vmin.xlane.f32.xlu0 %v185
    %v187 = vpop.xlane.xlu0 %186
    %vm188 = vcmp.eq.f32.partialorder %v185, %v187
    %v189 = vsel %vm188, %v184, inf
    %190 = vmin.xlane.f32.xlu0 %v189
    %v191 = vpop.xlane.xlu0 %190
    %v192 = vcvt.f32.s32 %v191
    %v193 = vcvt.f32.s32 %v187
    %v194 = vshll.u32 %v193, 16
    %v195 = vadd.s32 %v194, %v192
    %v196 = vsel %vm68, %v180, 2147483647
    %v197 = vand.u32 %v196, 65535
    %v198 = vshra.s32 %v196, 16
    %v199 = vcvt.s32.f32 %v197
    %v200 = vcvt.s32.f32 %v198
    %201 = vmin.xlane.f32.xlu0 %v200
    %v202 = vpop.xlane.xlu0 %201
    %vm203 = vcmp.eq.f32.partialorder %v200, %v202
    %v204 = vsel %vm203, %v199, inf
    %205 = vmin.xlane.f32.xlu0 %v204
    %v206 = vpop.xlane.xlu0 %205
    %v207 = vcvt.f32.s32 %v206
    %v208 = vcvt.f32.s32 %v202
    %v209 = vshll.u32 %v208, 16
    %v210 = vadd.s32 %v209, %v207
    %vm211 = vcmp.eq.f32.partialorder %v159, %v169
    %vm212 = vcmp.eq.f32.partialorder %v160, %v172
    %v213 = vsel %vm211, %v67, 16
    %v214 = vsel %vm212, %v67, 16
    %v215 = vsel %vm68, %v213, 2147483647
    %v216 = vand.u32 %v215, 65535
    %v217 = vshra.s32 %v215, 16
    %v218 = vcvt.s32.f32 %v216
    %v219 = vcvt.s32.f32 %v217
    %220 = vmin.xlane.f32.xlu0 %v219
    %v221 = vpop.xlane.xlu0 %220
    %vm222 = vcmp.eq.f32.partialorder %v219, %v221
    %v223 = vsel %vm222, %v218, inf
    %224 = vmin.xlane.f32.xlu0 %v223
    %v225 = vpop.xlane.xlu0 %224
    %v226 = vcvt.f32.s32 %v225
    %v227 = vcvt.f32.s32 %v221
    %v228 = vshll.u32 %v227, 16
    %v229 = vadd.s32 %v228, %v226
    %v230 = vsel %vm68, %v214, 2147483647
    %v231 = vand.u32 %v230, 65535
    %v232 = vshra.s32 %v230, 16
    %v233 = vcvt.s32.f32 %v231
    %v234 = vcvt.s32.f32 %v232
    %235 = vmin.xlane.f32.xlu0 %v234
    %v236 = vpop.xlane.xlu0 %235
    %vm237 = vcmp.eq.f32.partialorder %v234, %v236
    %v238 = vsel %vm237, %v233, inf
    %239 = vmin.xlane.f32.xlu0 %v238
    %v240 = vpop.xlane.xlu0 %239
    %v241 = vcvt.f32.s32 %v240
    %v242 = vcvt.f32.s32 %v236
    %v243 = vshll.u32 %v242, 16
    %v244 = vadd.s32 %v243, %v241
    %vm245 = vcmp.eq.s32.totalorder %v67, %v195
    %vm246 = vcmp.eq.s32.totalorder %v67, %v210
    %v247 = vsel %vm245, -1e+30, %v155
    %v248 = vsel %vm246, -1e+30, %v156
    %vm249 = vcmp.eq.s32.totalorder %v67, %v229
    %vm250 = vcmp.eq.s32.totalorder %v67, %v244
    %v251 = vsel %vm249, 1e+30, %v159
    %v252 = vsel %vm250, 1e+30, %v160
    %v253 = vsel %vm68, %v247, -inf
    %254 = vmax.xlane.f32.xlu0 %v253
    %v255 = vpop.xlane.xlu0 %254
    %v256 = vsel %vm68, %v248, -inf
    %257 = vmax.xlane.f32.xlu0 %v256
    %v258 = vpop.xlane.xlu0 %257
    %v259 = vsel %vm68, %v251, inf
    %260 = vmin.xlane.f32.xlu0 %v259
    %v261 = vpop.xlane.xlu0 %260
    %v262 = vsel %vm68, %v252, inf
    %263 = vmin.xlane.f32.xlu0 %v262
    %v264 = vpop.xlane.xlu0 %263
    %v265 = vadd.f32 %v173, %v255
    %v266 = vadd.f32 %v174, %v258
    %v267 = vadd.f32 %v175, %v261
    %v268 = vadd.f32 %v176, %v264
    %vm269 = vcmp.eq.f32.partialorder %v247, %v255
    %vm270 = vcmp.eq.f32.partialorder %v248, %v258
    %v271 = vsel %vm269, %v67, 16
    %v272 = vsel %vm270, %v67, 16
    %v273 = vsel %vm68, %v271, 2147483647
    %v274 = vand.u32 %v273, 65535
    %v275 = vshra.s32 %v273, 16
    %v276 = vcvt.s32.f32 %v274
    %v277 = vcvt.s32.f32 %v275
    %278 = vmin.xlane.f32.xlu0 %v277
    %v279 = vpop.xlane.xlu0 %278
    %vm280 = vcmp.eq.f32.partialorder %v277, %v279
    %v281 = vsel %vm280, %v276, inf
    %282 = vmin.xlane.f32.xlu0 %v281
    %v283 = vpop.xlane.xlu0 %282
    %v284 = vcvt.f32.s32 %v283
    %v285 = vcvt.f32.s32 %v279
    %v286 = vshll.u32 %v285, 16
    %v287 = vadd.s32 %v286, %v284
    %v288 = vsel %vm68, %v272, 2147483647
    %v289 = vand.u32 %v288, 65535
    %v290 = vshra.s32 %v288, 16
    %v291 = vcvt.s32.f32 %v289
    %v292 = vcvt.s32.f32 %v290
    %293 = vmin.xlane.f32.xlu0 %v292
    %v294 = vpop.xlane.xlu0 %293
    %vm295 = vcmp.eq.f32.partialorder %v292, %v294
    %v296 = vsel %vm295, %v291, inf
    %297 = vmin.xlane.f32.xlu0 %v296
    %v298 = vpop.xlane.xlu0 %297
    %v299 = vcvt.f32.s32 %v298
    %v300 = vcvt.f32.s32 %v294
    %v301 = vshll.u32 %v300, 16
    %v302 = vadd.s32 %v301, %v299
    %vm303 = vcmp.eq.f32.partialorder %v251, %v261
    %vm304 = vcmp.eq.f32.partialorder %v252, %v264
    %v305 = vsel %vm303, %v67, 16
    %v306 = vsel %vm304, %v67, 16
    %v307 = vsel %vm68, %v305, 2147483647
    %v308 = vand.u32 %v307, 65535
    %v309 = vshra.s32 %v307, 16
    %v310 = vcvt.s32.f32 %v308
    %v311 = vcvt.s32.f32 %v309
    %312 = vmin.xlane.f32.xlu0 %v311
    %v313 = vpop.xlane.xlu0 %312
    %vm314 = vcmp.eq.f32.partialorder %v311, %v313
    %v315 = vsel %vm314, %v310, inf
    %316 = vmin.xlane.f32.xlu0 %v315
    %v317 = vpop.xlane.xlu0 %316
    %v318 = vcvt.f32.s32 %v317
    %v319 = vcvt.f32.s32 %v313
    %v320 = vshll.u32 %v319, 16
    %v321 = vadd.s32 %v320, %v318
    %v322 = vsel %vm68, %v306, 2147483647
    %v323 = vand.u32 %v322, 65535
    %v324 = vshra.s32 %v322, 16
    %v325 = vcvt.s32.f32 %v323
    %v326 = vcvt.s32.f32 %v324
    %327 = vmin.xlane.f32.xlu0 %v326
    %v328 = vpop.xlane.xlu0 %327
    %vm329 = vcmp.eq.f32.partialorder %v326, %v328
    %v330 = vsel %vm329, %v325, inf
    %331 = vmin.xlane.f32.xlu0 %v330
    %v332 = vpop.xlane.xlu0 %331
    %v333 = vcvt.f32.s32 %v332
    %v334 = vcvt.f32.s32 %v328
    %v335 = vshll.u32 %v334, 16
    %v336 = vadd.s32 %v335, %v333
    %vm337 = vcmp.eq.s32.totalorder %v67, %v287
    %vm338 = vcmp.eq.s32.totalorder %v67, %v302
    %v339 = vsel %vm337, -1e+30, %v247
    %v340 = vsel %vm338, -1e+30, %v248
    %vm341 = vcmp.eq.s32.totalorder %v67, %v321
    %vm342 = vcmp.eq.s32.totalorder %v67, %v336
    %v343 = vsel %vm341, 1e+30, %v251
    %v344 = vsel %vm342, 1e+30, %v252
    %v345 = vsel %vm68, %v339, -inf
    %346 = vmax.xlane.f32.xlu0 %v345
    %v347 = vpop.xlane.xlu0 %346
    %v348 = vsel %vm68, %v340, -inf
    %349 = vmax.xlane.f32.xlu0 %v348
    %v350 = vpop.xlane.xlu0 %349
    %v351 = vsel %vm68, %v343, inf
    %352 = vmin.xlane.f32.xlu0 %v351
    %v353 = vpop.xlane.xlu0 %352
    %v354 = vsel %vm68, %v344, inf
    %355 = vmin.xlane.f32.xlu0 %v354
    %v356 = vpop.xlane.xlu0 %355
    %v357 = vadd.f32 %v265, %v347
    %v358 = vadd.f32 %v266, %v350
    %v359 = vadd.f32 %v267, %v353
    %v360 = vadd.f32 %v268, %v356
    %v361 = vmul.f32 %v357, 0.25
    %v362 = vmul.f32 %v358, 0.25
    %v363 = vmul.f32 %v359, 0.25
    %v364 = vmul.f32 %v360, 0.25
    %v365 = vsub.f32 %v363, %v361
    %v366 = vsub.f32 %v364, %v362
    %v367 = vmul.f32 %v365, %v64
    %v368 = vmul.f32 %v366, %v65
    %vm369 = vcmask 7168
    %v370 = vsel %vm369, %v367, 0.0
    %v371 = vrot.slane %v370, 4
    %v372 = vadd.f32 %v370, %v371
    %v373 = vrot.slane %v372, 2
    %v374 = vadd.f32 %v372, %v373
    %v375 = vrot.slane %v374, 1
    %v376 = vadd.f32 %v374, %v375
    %v377 = vsel %vm369, %v368, 0.0
    %v378 = vrot.slane %v377, 4
    %v379 = vadd.f32 %v377, %v378
    %v380 = vrot.slane %v379, 2
    %v381 = vadd.f32 %v379, %v380
    %v382 = vrot.slane %v381, 1
    %v383 = vadd.f32 %v381, %v382
    %v384 = vsel %vm369, %v376, 0.0
    %v385 = vsel %vm369, %v383, 0.0
    %v386 = vadd.f32 %v384, %v385
    %388 = vset.pattern.permute.xlu0 0
    %389 = vperm.xlu0 %388, %v64
    %v390 = vpop.permute.xlu0 %389
    %393 = vset.pattern.permute.xlu0 0
    %394 = vperm.xlu0 %393, %v65
    %v395 = vpop.permute.xlu0 %394
    %v397 = vmul.f32 %v62, %v390
    %v398 = vmul.f32 %v63, %v395
    %v399 = vlaneseq
    %v400 = vshrl.u32 %v399, 7
    %vm401 = vcmp.lt.s32.totalorder %v400, 7
    %v402 = vsel %vm401, %v397, -1e+30
    %v403 = vsel %vm401, %v398, -1e+30
    %v404 = vsel %vm68, %v402, -inf
    %v405 = vrot.slane %v404, 4
    %v406 = vmax.f32 %v404, %v405
    %v407 = vrot.slane %v406, 2
    %v408 = vmax.f32 %v406, %v407
    %v409 = vrot.slane %v408, 1
    %v410 = vmax.f32 %v408, %v409
    %v411 = vsel %vm68, %v403, -inf
    %v412 = vrot.slane %v411, 4
    %v413 = vmax.f32 %v411, %v412
    %v414 = vrot.slane %v413, 2
    %v415 = vmax.f32 %v413, %v414
    %v416 = vrot.slane %v415, 1
    %v417 = vmax.f32 %v415, %v416
    %v418 = vsub.f32 %v410, %v397
    %v419 = vsub.f32 %v417, %v398
    %v420 = vand.u32 2147483647, %v418
    %v421 = vand.u32 2147483647, %v419
    %vm422 = vcmask 130055
    %v423 = vsel %vm422, %v420, 0.0
    %424 = vadd.xlane.f32.xlu0 %v423
    %v425 = vpop.xlane.xlu0 %424
    %v426 = vsel %vm422, %v421, 0.0
    %427 = vadd.xlane.f32.xlu0 %v426
    %v428 = vpop.xlane.xlu0 %427
    %vm429 = vcmask 1047559
    %v430 = vsel %vm429, %v425, 0.0
    %v431 = vsel %vm429, %v428, 0.0
    %v432 = vadd.f32 %v430, %v431
    %v433 = vld [vmem:[#allocation2] sm:$0x1]
    %v434 = vmul.f32 %v386, 0.5
    %v435 = vmul.f32 %v432, 0.03125
    %v436 = vsub.f32 %v434, %v435
    %v438 = vcombine.high %v436, %v436
    %v440 = vunpack.c.l.s4 1966171168
    %v441 = vunpack.c.0.s8 %v440
    %v442 = vlaneseq
    %v443 = vshrl.u32 %v442, 7
    %v444 = vsub.s32 %v441, %v443
    %v445 = vrot.slane %v438, %v444
    %v446 = vcombine.high %v445, %v445
    %v448 = vunpack.c.l.s4 1966171168
    %v449 = vunpack.c.0.s8 %v448
    %v450 = vlaneseq
    %v451 = vshrl.u32 %v450, 7
    %v452 = vsub.s32 %v449, %v451
    %v453 = vrot.slane %v446, %v452
    %v454 = vcombine.high %v453, %v453
    %v456 = vadd.f32 %v433, %v454
    %vm457 = vcmask 0
    %458 = vst.msk [vmem:[#allocation2] sm:$0x1] %vm457, %v456
    // Predicated region
    $region14: #{tpu_custom_call.1} parent=1 // pred_check
      %p459 = pneg %p56
    $region15: #{tpu_custom_call.1} parent=1 // pred_check_branch
      %461 = sbr.rel (%p459) target = $region17
    $region16: #{tpu_custom_call.1} parent=1 // pred_region
      %v462 = vld [vmem:[#allocation2] sm:$0x1]
      %463 = vst.msk [vmem:[#allocation3] sm:$0x1] %vm457, %v462
    $region17: #{tpu_custom_call.1} parent=1 // pred_fallthru
      _
    // Predicated region
    $region18: #{tpu_custom_call.1} parent=1 // pred_check
      _
    $region19: #{tpu_custom_call.1} parent=1 // pred_check_branch
      %465 = sbr.rel (0) target = $region21
    $region20: #{tpu_custom_call.1} parent=1 // pred_region
      %s467 = ssub.s32 16, 16
      %468 = vsyncadd [#allocation4], %s467
      %s470 = sshll.u32 [#allocation3], 4
      %s471 = int_to_ptr.vmem [resolvable:$true] %s470
      %473 = dma.vmem_to_hbm [thread:$0]  %s471, 16, %s2, [#allocation4]
    $region21: #{tpu_custom_call.1} parent=1 // pred_fallthru
      _
    // Predicated region
    $region22: #{tpu_custom_call.1} parent=1 // pred_check
      _
    $region23: #{tpu_custom_call.1} parent=1 // pred_check_branch
      %475 = sbr.rel (0) target = $region25
    $region24: #{tpu_custom_call.1} parent=1 // pred_region
      %476 = dma.done [#allocation4], 16
    $region25: #{tpu_custom_call.1} parent=1 // pred_fallthru
      _
    %477 = vsyncpa [#allocation4], 1

</llo_original>
